<compile_context>
chip_gen: v5e
topology: v5e:2x2
jax: 0.10.0
libtpu: 0.0.40
codegen_flags: <defaults>
</compile_context>

<pallas_src>
import math
import functools

import jax
import jax.numpy as jnp
from jax.experimental import pallas as pl
from jax.experimental.pallas import tpu as pltpu


def _mha_kernel(x_ref, winw_ref, winb_ref, projw_ref, projb_ref, o_ref,
                acc_ref, k_ref, v_ref,
                *, d_k, scale, causal, kv_tile, num_kv_tiles):
    h = pl.program_id(1)
    num_heads = pl.num_programs(1)

    x = x_ref[0].astype(jnp.bfloat16)                      # (L, D)  bf16 for MXU
    L = x.shape[0]

    # --- per-head QKV projection: bf16 inputs, f32 accumulation on the MXU ---
    qkv = jnp.dot(x, winw_ref[0],
                  preferred_element_type=jnp.float32) + winb_ref[0]   # (L, 3*d_k) f32
    # Fold the 1/sqrt(d_k) scale into Q before casting down.
    q = (qkv[:, 0 * d_k:1 * d_k] * scale).astype(jnp.bfloat16)        # (L, d_k)
    k_ref[...] = qkv[:, 1 * d_k:2 * d_k].astype(jnp.bfloat16)         # (L, d_k)
    v_ref[...] = qkv[:, 2 * d_k:3 * d_k].astype(jnp.bfloat16)         # (L, d_k)

    if causal:
        row = jax.lax.broadcasted_iota(jnp.int32, (L, kv_tile), 0)

    def attend(carry, k_blk, v_blk, col0):
        m, l, acc = carry
        # q @ k^T without materializing a transposed copy of K
        # (contract the last axis of both operands).
        s = jax.lax.dot_general(q, k_blk, (((1,), (1,)), ((), ())),
                                preferred_element_type=jnp.float32)   # (L, kv_tile)
        if causal:
            col = col0 + jax.lax.broadcasted_iota(jnp.int32, (L, kv_tile), 1)
            s = jnp.where(col > row, -jnp.inf, s)      # scalar -inf, no (L,L) constant
        m_new = jnp.maximum(m, jnp.max(s, axis=-1, keepdims=True))
        alpha = jnp.exp(m - m_new)
        p = jnp.exp(s - m_new)
        l_new = alpha * l + jnp.sum(p, axis=-1, keepdims=True)
        acc_new = alpha * acc + jnp.dot(p.astype(jnp.bfloat16), v_blk,
                                        preferred_element_type=jnp.float32)
        return m_new, l_new, acc_new

    init = (jnp.full((L, 1), -jnp.inf, jnp.float32),   # running max
            jnp.zeros((L, 1), jnp.float32),            # running denominator
            jnp.zeros((L, d_k), jnp.float32))          # unnormalized P@V accumulator

    if num_kv_tiles == 1:
        m_i, l_i, acc = attend(init, k_ref[...], v_ref[...], 0)
    else:
        def body(kvi, carry):
            start = pl.multiple_of(kvi * kv_tile, kv_tile)
            return attend(carry,
                          k_ref[pl.ds(start, kv_tile), :],
                          v_ref[pl.ds(start, kv_tile), :],
                          start)
        m_i, l_i, acc = jax.lax.fori_loop(0, num_kv_tiles, body, init)

    # Fold softmax normalization here; EUP approx reciprocal is ~free.
    head_out = acc * pl.reciprocal(l_i, approx=True)           # (L, d_k) f32

    # --- accumulate the output projection across heads (no concat) ---
    @pl.when(h == 0)
    def _():
        acc_ref[...] = jnp.zeros_like(acc_ref)

    acc_ref[...] += jnp.dot(head_out.astype(jnp.bfloat16), projw_ref[0],
                            preferred_element_type=jnp.float32)       # (L, D)

    @pl.when(h == num_heads - 1)
    def _():
        o_ref[0] = (acc_ref[...] + projb_ref[...]).astype(o_ref.dtype)


def _pick_kv_tile(L, kv_block=None):
    if kv_block is not None and L % kv_block == 0:
        return kv_block
    if L <= 512:
        return L
    for t in (512, 256, 128):
        if L % t == 0:
            return t
    return L


def custom_mha_pallas(x, win_w, win_b, proj_w, proj_b, *, num_heads,
                      causal_mask=False, kv_block=None):
    B, L, D = x.shape
    H = num_heads
    d_k = D // H
    scale = 1.0 / math.sqrt(d_k)

    kv_tile = _pick_kv_tile(L, kv_block)
    num_kv_tiles = L // kv_tile

    # Re-layout weights for per-head streaming and cast to bf16 (halves the
    # weight DMA traffic; only a (D, 3*d_k) slab is resident per grid step).
    w_h = (win_w.reshape(D, 3, H, d_k).transpose(2, 0, 1, 3)
           .reshape(H, D, 3 * d_k).astype(jnp.bfloat16))              # (H, D, 3*d_k)
    b_h = (win_b.reshape(3, H, d_k).transpose(1, 0, 2)
           .reshape(H, 1, 3 * d_k).astype(jnp.float32))               # (H, 1, 3*d_k)
    pw_h = proj_w.reshape(H, d_k, D).astype(jnp.bfloat16)             # (H, d_k, D)
    pb = proj_b.astype(jnp.float32)                                   # (1, D)

    kernel = functools.partial(_mha_kernel, d_k=d_k, scale=scale,
                               causal=causal_mask, kv_tile=kv_tile,
                               num_kv_tiles=num_kv_tiles)

    return pl.pallas_call(
        kernel,
        out_shape=jax.ShapeDtypeStruct((B, L, D), x.dtype),
        grid_spec=pltpu.PrefetchScalarGridSpec(
            num_scalar_prefetch=0,
            grid=(B, H),
            in_specs=[
                pl.BlockSpec((1, L, D), lambda b, h: (b, 0, 0)),        # x (resident across heads)
                pl.BlockSpec((1, D, 3 * d_k), lambda b, h: (h, 0, 0)),  # per-head Win weights
                pl.BlockSpec((1, 1, 3 * d_k), lambda b, h: (h, 0, 0)),  # per-head Win bias
                pl.BlockSpec((1, d_k, D), lambda b, h: (h, 0, 0)),      # per-head proj rows
                pl.BlockSpec((1, D), lambda b, h: (0, 0)),              # proj bias
            ],
            out_specs=pl.BlockSpec((1, L, D), lambda b, h: (b, 0, 0)),
            scratch_shapes=[
                pltpu.VMEM((L, D), jnp.float32),      # output-projection accumulator
                pltpu.VMEM((L, d_k), jnp.bfloat16),   # K for the current head
                pltpu.VMEM((L, d_k), jnp.bfloat16),   # V for the current head
            ],
        ),
        compiler_params=pltpu.CompilerParams(
            dimension_semantics=("parallel", "arbitrary"),
            vmem_limit_bytes=48 * 1024 * 1024,
        ),
    )(x, w_h, b_h, pw_h, pb)


def custom_mha_ref(x, win_w, win_b, proj_w, proj_b, *, num_heads,
                   causal_mask=False):
    """Pure-JAX f32 reference mirroring the PyTorch forward (eval mode)."""
    B, L, D = x.shape
    d_k = D // num_heads
    scale = 1.0 / math.sqrt(d_k)
    qkv = x @ win_w + win_b[0]
    q, k, v = jnp.split(qkv, 3, axis=-1)

    def heads(t):
        return t.reshape(B, L, num_heads, d_k).transpose(0, 2, 1, 3)

    q, k, v = heads(q), heads(k), heads(v)
    s = jnp.einsum("bhqd,bhkd->bhqk", q, k) * scale
    if causal_mask:
        mask = jnp.triu(jnp.ones((L, L), dtype=bool), k=1)
        s = jnp.where(mask[None, None], -jnp.inf, s)
    a = jax.nn.softmax(s, axis=-1)
    z = jnp.einsum("bhqk,bhkd->bhqd", a, v)
    z = z.transpose(0, 2, 1, 3).reshape(B, L, D)
    return z @ proj_w + proj_b[0]


if __name__ == "__main__":
    key = jax.random.PRNGKey(0)

    configs = [
        # (B, L, D, H, kv_block)
        (2, 8, 32, 4, None),       # tiny demo shape (single KV-tile path)
        (1, 256, 128, 2, 128),     # exercises the KV-tiled online-softmax loop
    ]

    for (B, L, D, H, kv_block) in configs:
        key, kx, k1, k2, k3, k4 = jax.random.split(key, 6)
        x = jax.random.normal(kx, (B, L, D), dtype=jnp.float32)

        bound = 1.0 / math.sqrt(D)
        win_w = jax.random.uniform(k1, (D, 3 * D), jnp.float32, -bound, bound)
        win_b = jax.random.uniform(k2, (1, 3 * D), jnp.float32, -bound, bound)
        proj_w = jax.random.uniform(k3, (D, D), jnp.float32, -bound, bound)
        proj_b = jax.random.uniform(k4, (1, D), jnp.float32, -bound, bound)

        for causal in (False, True):
            out = custom_mha_pallas(x, win_w, win_b, proj_w, proj_b,
                                    num_heads=H, causal_mask=causal,
                                    kv_block=kv_block)
            out = jax.block_until_ready(out)
            ref = custom_mha_ref(x, win_w, win_b, proj_w, proj_b,
                                 num_heads=H, causal_mask=causal)
            assert out.shape == (B, L, D)
            err = float(jnp.max(jnp.abs(out - ref)))
            # bf16 MXU inputs vs f32 reference -> loose but meaningful tolerance.
            assert jnp.allclose(out, ref, atol=5e-2, rtol=5e-2), (
                f"mismatch (B={B}, L={L}, causal={causal}): max|err|={err}")

    print("KERNEL_OK")
</pallas_src>

<mosaic_0001>
module attributes {stable_mosaic.version = 11 : i64} {
  func.func @_mha_kernel(%arg0: i32, %arg1: i32, %arg2: memref<1x8x32xf32, #tpu.memory_space<vmem>>, %arg3: memref<1x32x24xbf16, #tpu.memory_space<vmem>>, %arg4: memref<1x1x24xf32, #tpu.memory_space<vmem>>, %arg5: memref<1x8x32xbf16, #tpu.memory_space<vmem>>, %arg6: memref<1x32xf32, #tpu.memory_space<vmem>>, %arg7: memref<1x8x32xf32, #tpu.memory_space<vmem>>, %arg8: memref<8x32xf32, #tpu.memory_space<vmem>>, %arg9: memref<8x8xbf16, #tpu.memory_space<vmem>>, %arg10: memref<8x8xbf16, #tpu.memory_space<vmem>>) attributes {dimension_semantics = [#tpu.dimension_semantics<parallel>, #tpu.dimension_semantics<arbitrary>], iteration_bounds = array<i64: 2, 4>, scalar_prefetch = 0 : i64, scratch_operands = 3 : i64, tpu.core_type = #tpu.core_type<tc>, window_params = [{transform_indices = @transform_0, window_bounds = array<i64: 1, 8, 32>}, {transform_indices = @transform_1, window_bounds = array<i64: 1, 32, 24>}, {transform_indices = @transform_2, window_bounds = array<i64: 1, 1, 24>}, {transform_indices = @transform_3, window_bounds = array<i64: 1, 8, 32>}, {pipeline_mode = #tpu.pipeline_mode<synchronous>, transform_indices = @transform_4, window_bounds = array<i64: 1, 32>}, {transform_indices = @transform_5, window_bounds = array<i64: 1, 8, 32>}]} {
    %c0 = arith.constant 0 : index
    %c0_0 = arith.constant 0 : index
    %c0_1 = arith.constant 0 : index
    %0 = vector.load %arg2[%c0, %c0_0, %c0_1] : memref<1x8x32xf32, #tpu.memory_space<vmem>>, vector<1x8x32xf32>
    %1 = vector.shape_cast %0 : vector<1x8x32xf32> to vector<8x32xf32>
    %2 = arith.truncf %1 : vector<8x32xf32> to vector<8x32xbf16>
    %c0_2 = arith.constant 0 : index
    %c0_3 = arith.constant 0 : index
    %c0_4 = arith.constant 0 : index
    %3 = vector.load %arg3[%c0_2, %c0_3, %c0_4] : memref<1x32x24xbf16, #tpu.memory_space<vmem>>, vector<1x32x24xbf16>
    %4 = vector.shape_cast %3 : vector<1x32x24xbf16> to vector<32x24xbf16>
    %cst = arith.constant dense<0.000000e+00> : vector<8x24xf32>
    %5 = tpu.matmul %2, %4, %cst {dimension_numbers = #tpu.dot_dimension_numbers<[1], [0], [0], [1], [0, 0, 1, 1], [], []>} : vector<8x32xbf16>, vector<32x24xbf16>, vector<8x24xf32> -> vector<8x24xf32>
    %c0_5 = arith.constant 0 : index
    %c0_6 = arith.constant 0 : index
    %c0_7 = arith.constant 0 : index
    %6 = vector.load %arg4[%c0_5, %c0_6, %c0_7] : memref<1x1x24xf32, #tpu.memory_space<vmem>>, vector<1x1x24xf32>
    %7 = vector.shape_cast %6 : vector<1x1x24xf32> to vector<1x24xf32>
    %8 = vector.broadcast %7 : vector<1x24xf32> to vector<8x24xf32>
    %9 = arith.addf %5, %8 : vector<8x24xf32>
    %10 = vector.extract_strided_slice %9 {offsets = [0, 0], sizes = [8, 8], strides = [1, 1]} : vector<8x24xf32> to vector<8x8xf32>
    %cst_8 = arith.constant 0.353553385 : f32
    %11 = vector.broadcast %cst_8 : f32 to vector<8x8xf32>
    %12 = arith.mulf %10, %11 : vector<8x8xf32>
    %13 = arith.truncf %12 : vector<8x8xf32> to vector<8x8xbf16>
    %14 = vector.extract_strided_slice %9 {offsets = [0, 8], sizes = [8, 8], strides = [1, 1]} : vector<8x24xf32> to vector<8x8xf32>
    %15 = arith.truncf %14 : vector<8x8xf32> to vector<8x8xbf16>
    %c0_9 = arith.constant 0 : index
    %c0_10 = arith.constant 0 : index
    %16 = vector.load %arg9[%c0_9, %c0_10] : memref<8x8xbf16, #tpu.memory_space<vmem>>, vector<8x8xbf16>
    tpu.vector_store %arg9[%c0_9, %c0_10], %15 {strides = array<i32>} : memref<8x8xbf16, #tpu.memory_space<vmem>>, vector<8x8xbf16>,
    %17 = vector.extract_strided_slice %9 {offsets = [0, 16], sizes = [8, 8], strides = [1, 1]} : vector<8x24xf32> to vector<8x8xf32>
    %18 = arith.truncf %17 : vector<8x8xf32> to vector<8x8xbf16>
    %c0_11 = arith.constant 0 : index
    %c0_12 = arith.constant 0 : index
    %19 = vector.load %arg10[%c0_11, %c0_12] : memref<8x8xbf16, #tpu.memory_space<vmem>>, vector<8x8xbf16>
    tpu.vector_store %arg10[%c0_11, %c0_12], %18 {strides = array<i32>} : memref<8x8xbf16, #tpu.memory_space<vmem>>, vector<8x8xbf16>,
    %cst_13 = arith.constant 0xFF800000 : f32
    %20 = vector.broadcast %cst_13 : f32 to vector<8x1xf32>
    %cst_14 = arith.constant 0.000000e+00 : f32
    %21 = vector.broadcast %cst_14 : f32 to vector<8x1xf32>
    %cst_15 = arith.constant 0.000000e+00 : f32
    %22 = vector.broadcast %cst_15 : f32 to vector<8x8xf32>
    %c0_16 = arith.constant 0 : index
    %c0_17 = arith.constant 0 : index
    %23 = vector.load %arg9[%c0_16, %c0_17] : memref<8x8xbf16, #tpu.memory_space<vmem>>, vector<8x8xbf16>
    %c0_18 = arith.constant 0 : index
    %c0_19 = arith.constant 0 : index
    %24 = vector.load %arg10[%c0_18, %c0_19] : memref<8x8xbf16, #tpu.memory_space<vmem>>, vector<8x8xbf16>
    %cst_20 = arith.constant dense<0.000000e+00> : vector<8x8xf32>
    %25 = tpu.matmul %13, %23, %cst_20 {dimension_numbers = #tpu.dot_dimension_numbers<[1], [1], [0], [0], [0, 0, 1, 0], [], []>} : vector<8x8xbf16>, vector<8x8xbf16>, vector<8x8xf32> -> vector<8x8xf32>
    %cst_21 = arith.constant dense<0xFF800000> : vector<8xf32>
    %26 = vector.multi_reduction <maximumf>, %25, %cst_21 [1] : vector<8x8xf32> to vector<8xf32>
    %27 = vector.shape_cast %26 : vector<8xf32> to vector<8x1xf32>
    %28 = arith.maximumf %20, %27 : vector<8x1xf32>
    %29 = arith.subf %20, %28 : vector<8x1xf32>
    %30 = math.exp %29 : vector<8x1xf32>
    %31 = vector.broadcast %28 : vector<8x1xf32> to vector<8x8xf32>
    %32 = arith.subf %25, %31 : vector<8x8xf32>
    %33 = math.exp %32 : vector<8x8xf32>
    %34 = arith.mulf %30, %21 : vector<8x1xf32>
    %cst_22 = arith.constant dense<0.000000e+00> : vector<8xf32>
    %35 = vector.multi_reduction <add>, %33, %cst_22 [1] : vector<8x8xf32> to vector<8xf32>
    %36 = vector.shape_cast %35 : vector<8xf32> to vector<8x1xf32>
    %37 = arith.addf %34, %36 : vector<8x1xf32>
    %38 = vector.broadcast %30 : vector<8x1xf32> to vector<8x8xf32>
    %39 = arith.mulf %38, %22 : vector<8x8xf32>
    %40 = arith.truncf %33 : vector<8x8xf32> to vector<8x8xbf16>
    %cst_23 = arith.constant dense<0.000000e+00> : vector<8x8xf32>
    %41 = tpu.matmul %40, %24, %cst_23 {dimension_numbers = #tpu.dot_dimension_numbers<[1], [0], [0], [1], [0, 0, 1, 1], [], []>} : vector<8x8xbf16>, vector<8x8xbf16>, vector<8x8xf32> -> vector<8x8xf32>
    %42 = arith.addf %39, %41 : vector<8x8xf32>
    %43 = tpu.reciprocal %37 {approx = true} : vector<8x1xf32> -> vector<8x1xf32>
    %44 = vector.broadcast %43 : vector<8x1xf32> to vector<8x8xf32>
    %45 = arith.mulf %42, %44 : vector<8x8xf32>
    %c0_i32 = arith.constant 0 : i32
    %46 = arith.cmpi eq, %arg1, %c0_i32 : i32
    %47 = arith.extui %46 : i1 to i32
    %c0_i32_24 = arith.constant 0 : i32
    %48 = arith.cmpi ne, %47, %c0_i32_24 : i32
    scf.if %48 {
      %cst_34 = arith.constant 0.000000e+00 : f32
      %59 = vector.broadcast %cst_34 : f32 to vector<8x32xf32>
      %c0_35 = arith.constant 0 : index
      %c0_36 = arith.constant 0 : index
      %60 = vector.load %arg8[%c0_35, %c0_36] : memref<8x32xf32, #tpu.memory_space<vmem>>, vector<8x32xf32>
      tpu.vector_store %arg8[%c0_35, %c0_36], %59 {strides = array<i32>} : memref<8x32xf32, #tpu.memory_space<vmem>>, vector<8x32xf32>,
    } else {
    }
    %c0_25 = arith.constant 0 : index
    %c0_26 = arith.constant 0 : index
    %49 = vector.load %arg8[%c0_25, %c0_26] : memref<8x32xf32, #tpu.memory_space<vmem>>, vector<8x32xf32>
    %50 = arith.truncf %45 : vector<8x8xf32> to vector<8x8xbf16>
    %c0_27 = arith.constant 0 : index
    %c0_28 = arith.constant 0 : index
    %c0_29 = arith.constant 0 : index
    %51 = vector.load %arg5[%c0_27, %c0_28, %c0_29] : memref<1x8x32xbf16, #tpu.memory_space<vmem>>, vector<1x8x32xbf16>
    %52 = vector.shape_cast %51 : vector<1x8x32xbf16> to vector<8x32xbf16>
    %cst_30 = arith.constant dense<0.000000e+00> : vector<8x32xf32>
    %53 = tpu.matmul %50, %52, %cst_30 {dimension_numbers = #tpu.dot_dimension_numbers<[1], [0], [0], [1], [0, 0, 1, 1], [], []>} : vector<8x8xbf16>, vector<8x32xbf16>, vector<8x32xf32> -> vector<8x32xf32>
    %54 = arith.addf %49, %53 : vector<8x32xf32>
    %c0_31 = arith.constant 0 : index
    %c0_32 = arith.constant 0 : index
    %55 = vector.load %arg8[%c0_31, %c0_32] : memref<8x32xf32, #tpu.memory_space<vmem>>, vector<8x32xf32>
    tpu.vector_store %arg8[%c0_31, %c0_32], %54 {strides = array<i32>} : memref<8x32xf32, #tpu.memory_space<vmem>>, vector<8x32xf32>,
    %c3_i32 = arith.constant 3 : i32
    %56 = arith.cmpi eq, %arg1, %c3_i32 : i32
    %57 = arith.extui %56 : i1 to i32
    %c0_i32_33 = arith.constant 0 : i32
    %58 = arith.cmpi ne, %57, %c0_i32_33 : i32
    scf.if %58 {
      %c0_34 = arith.constant 0 : index
      %c0_35 = arith.constant 0 : index
      %59 = vector.load %arg8[%c0_34, %c0_35] : memref<8x32xf32, #tpu.memory_space<vmem>>, vector<8x32xf32>
      %c0_36 = arith.constant 0 : index
      %c0_37 = arith.constant 0 : index
      %60 = vector.load %arg6[%c0_36, %c0_37] : memref<1x32xf32, #tpu.memory_space<vmem>>, vector<1x32xf32>
      %61 = vector.broadcast %60 : vector<1x32xf32> to vector<8x32xf32>
      %62 = arith.addf %59, %61 : vector<8x32xf32>
      %c0_38 = arith.constant 0 : index
      %c0_39 = arith.constant 0 : index
      %c0_40 = arith.constant 0 : index
      %63 = vector.load %arg7[%c0_38, %c0_39, %c0_40] : memref<1x8x32xf32, #tpu.memory_space<vmem>>, vector<1x8x32xf32>
      %64 = vector.shape_cast %63 : vector<1x8x32xf32> to vector<8x32xf32>
      %65 = vector.shape_cast %62 : vector<8x32xf32> to vector<1x8x32xf32>
      tpu.vector_store %arg7[%c0_38, %c0_39, %c0_40], %65 {strides = array<i32>} : memref<1x8x32xf32, #tpu.memory_space<vmem>>, vector<1x8x32xf32>,
    } else {
    }
    return
  }
  func.func @transform_0(%arg0: i32, %arg1: i32) -> (i32, i32, i32) {
    %c0_i32 = arith.constant 0 : i32
    %c0_i32_0 = arith.constant 0 : i32
    %c0_i32_1 = arith.constant 0 : i32
    return %arg0, %c0_i32, %c0_i32_0 : i32, i32, i32
  }
  func.func @transform_1(%arg0: i32, %arg1: i32) -> (i32, i32, i32) {
    %c0_i32 = arith.constant 0 : i32
    %c0_i32_0 = arith.constant 0 : i32
    %c0_i32_1 = arith.constant 0 : i32
    return %arg1, %c0_i32, %c0_i32_0 : i32, i32, i32
  }
  func.func @transform_2(%arg0: i32, %arg1: i32) -> (i32, i32, i32) {
    %c0_i32 = arith.constant 0 : i32
    %c0_i32_0 = arith.constant 0 : i32
    %c0_i32_1 = arith.constant 0 : i32
    return %arg1, %c0_i32, %c0_i32_0 : i32, i32, i32
  }
  func.func @transform_3(%arg0: i32, %arg1: i32) -> (i32, i32, i32) {
    %c0_i32 = arith.constant 0 : i32
    %c0_i32_0 = arith.constant 0 : i32
    %c0_i32_1 = arith.constant 0 : i32
    return %arg1, %c0_i32, %c0_i32_0 : i32, i32, i32
  }
  func.func @transform_4(%arg0: i32, %arg1: i32) -> (i32, i32) {
    %c0_i32 = arith.constant 0 : i32
    %c0_i32_0 = arith.constant 0 : i32
    %c0_i32_1 = arith.constant 0 : i32
    return %c0_i32, %c0_i32_0 : i32, i32
  }
  func.func @transform_5(%arg0: i32, %arg1: i32) -> (i32, i32, i32) {
    %c0_i32 = arith.constant 0 : i32
    %c0_i32_0 = arith.constant 0 : i32
    %c0_i32_1 = arith.constant 0 : i32
    return %arg0, %c0_i32, %c0_i32_0 : i32, i32, i32
  }
}

</mosaic_0001>

<llo_original>
// kernel: tpu_custom_call.1
$region0: #{tpu_custom_call.1}
  #allocation0 [shape = 'u32[]', space=smem, size = 0x4, offset = 0x4, fixed_abs, tag = 'smem constant byte address 0x4 - core index']
  #allocation1 [shape = 'u32[72,128]{1,0:T(1,128)}', space=vmem, size = 0x9000, scoped, tag = 'internal scratch']
  #allocation2 [shape = 'f32[8,32]{1,0:T(8,128)}', space=vmem, size = 0x1000, scoped, tag = 'scratch operand']
  #allocation3 [shape = 'bf16[8,8]{1,0:T(8,128)(2,1)}', space=vmem, size = 0x800, scoped, tag = 'scratch operand']
  #allocation4 [shape = 'bf16[8,8]{1,0:T(8,128)(2,1)}', space=vmem, size = 0x800, scoped, tag = 'scratch operand']
  %s0 = inlined_call_operand.vmem [shape: f32[2,8,32], index: 0, kind: input, shape index: {}]
  %s1 = inlined_call_operand.vmem [shape: bf16[4,32,24], index: 1, kind: input, shape index: {}]
  %s2 = inlined_call_operand.vmem [shape: f32[4,1,24], index: 2, kind: input, shape index: {}]
  %s3 = inlined_call_operand.vmem [shape: bf16[4,8,32], index: 3, kind: input, shape index: {}]
  %s4 = inlined_call_operand.vmem [shape: f32[1,32], index: 4, kind: input, shape index: {}]
  %s5 = inlined_call_operand.hbm [shape: f32[2,8,32], index: 5, kind: output, shape index: {}]
  %s6 = sld [smem:[#allocation0]]
  $region61: #{tpu_custom_call.1} parent=0
    _
  %s8 = ssub.s32 1, %s6
  %s9 = scalar_select 0, %s8, %s6
  $region1: #{tpu_custom_call.1} parent=0
    #allocation5 [shape = 'u8[8192]{0}', space=vmem, size = 0x2000, scoped, tag = 'output window, operand 0']
    #allocation6 [shape = 's32[2]{0}', space=sflag, size = 0x8, scoped, tag = 'scoped memory for tpu_custom_call.1']
    %10 = vsyncpa [#allocation6], 0
    %s11 = scalar_lea.sflag [#allocation6], 1
    %12 = vsyncpa %s11, 0
    loop: start=0, step=1, limit=10
    $region2: #{tpu_custom_call.1} parent=1 // loop_pre_header
      _
    $region3: #{tpu_custom_call.1} parent=1 // loop_header
      %s14 = sphi 0, %s18
      %p15 = scmp.ge.s32.totalorder %s14, 10
      %s21 = sphi 0, %s33
      %s22 = sphi 0, %s29
      %s23 = sphi 0, %s21
      %s24 = sphi 0, %s22
      %s25 = sphi 0, %s23
      %s26 = sphi 0, %s24
      %s36 = sphi 0, %s38
      %s39 = sphi 0, %s36
      %s40 = sphi 0, %s39
      %s56 = sphi 0, %s40
      %s62 = sphi 0, %s64
      %s65 = sphi 0, %s62
      %s66 = sphi 0, %s65
      %s82 = sphi 0, %s66
      %s88 = sphi 0, %s90
      %s91 = sphi 0, %s88
      %s92 = sphi 0, %s91
      %s108 = sphi 0, %s92
      %s114 = sphi 0, %s116
      %s117 = sphi 0, %s114
      %s118 = sphi 0, %s117
      %s134 = sphi 0, %s118
      %s138 = sphi 0, %s138
      %s140 = sphi 0, %s138
      %s141 = sphi 0, %s140
      %s155 = sphi 0, %s141
      %s161 = sphi 0, %s163
      %s164 = sphi 0, %s161
      %s165 = sphi 0, %s164
      %s181 = sphi 0, %s165
    $region4: #{tpu_custom_call.1} parent=1 // loop_header_branch
      %17 = sbr.rel (%p15) target = $region8
    $region5: #{tpu_custom_call.1} parent=1 // loop_body
      %s19 = ssub.s32 %s14, 1
      %s20 = ssub.s32 %s14, 2
      %s27 = sadd.s32 1, %s22
      %p28 = scmp.ge.s32.totalorder %s27, 4
      %s29 = scalar_select %p28, 0, %s27
      %s30 = sadd.s32 1, %s21
      %s31 = scalar_select %p28, %s30, %s21
      %p32 = scmp.ge.s32.totalorder %s31, 2
      %s33 = scalar_select %p32, 0, %s31
      %s34 = ssub.s32 %s21, %s33
      %p35 = scmp.eq.s32.totalorder %s34, 0
      %s37 = sadd.s32 %s36, 1
      %s38 = scalar_select %p35, %s36, %s37
      %p41 = pneg %p35
      %p42 = scmp.eq.s32.totalorder %s14, 7
      %p43 = por %p41, %p42
      %p44 = scmp.ne.s32.totalorder %s36, %s39
      %p45 = scmp.eq.s32.totalorder %s14, 0
      %p46 = por %p44, %p45
      %p47 = scmp.ne.s32.totalorder %s36, %s39
      %p48 = scmp.eq.s32.totalorder %s19, 7
      %p49 = por %p47, %p48
      %p50 = scmp.ne.s32.totalorder %s39, %s40
      %p51 = scmp.eq.s32.totalorder %s19, 0
      %p52 = por %p50, %p51
      %p53 = scmp.ne.s32.totalorder %s39, %s40
      %p54 = scmp.eq.s32.totalorder %s20, 7
      %p55 = por %p53, %p54
      %p57 = scmp.ne.s32.totalorder %s40, %s56
      %p58 = scmp.eq.s32.totalorder %s20, 0
      %p59 = por %p57, %p58
      %s60 = ssub.s32 %s22, %s29
      %p61 = scmp.eq.s32.totalorder %s60, 0
      %s63 = sadd.s32 %s62, 1
      %s64 = scalar_select %p61, %s62, %s63
      %p67 = pneg %p61
      %p68 = scmp.eq.s32.totalorder %s14, 7
      %p69 = por %p67, %p68
      %p70 = scmp.ne.s32.totalorder %s62, %s65
      %p71 = scmp.eq.s32.totalorder %s14, 0
      %p72 = por %p70, %p71
      %p73 = scmp.ne.s32.totalorder %s62, %s65
      %p74 = scmp.eq.s32.totalorder %s19, 7
      %p75 = por %p73, %p74
      %p76 = scmp.ne.s32.totalorder %s65, %s66
      %p77 = scmp.eq.s32.totalorder %s19, 0
      %p78 = por %p76, %p77
      %p79 = scmp.ne.s32.totalorder %s65, %s66
      %p80 = scmp.eq.s32.totalorder %s20, 7
      %p81 = por %p79, %p80
      %p83 = scmp.ne.s32.totalorder %s66, %s82
      %p84 = scmp.eq.s32.totalorder %s20, 0
      %p85 = por %p83, %p84
      %s86 = ssub.s32 %s22, %s29
      %p87 = scmp.eq.s32.totalorder %s86, 0
      %s89 = sadd.s32 %s88, 1
      %s90 = scalar_select %p87, %s88, %s89
      %p93 = pneg %p87
      %p94 = scmp.eq.s32.totalorder %s14, 7
      %p95 = por %p93, %p94
      %p96 = scmp.ne.s32.totalorder %s88, %s91
      %p97 = scmp.eq.s32.totalorder %s14, 0
      %p98 = por %p96, %p97
      %p99 = scmp.ne.s32.totalorder %s88, %s91
      %p100 = scmp.eq.s32.totalorder %s19, 7
      %p101 = por %p99, %p100
      %p102 = scmp.ne.s32.totalorder %s91, %s92
      %p103 = scmp.eq.s32.totalorder %s19, 0
      %p104 = por %p102, %p103
      %p105 = scmp.ne.s32.totalorder %s91, %s92
      %p106 = scmp.eq.s32.totalorder %s20, 7
      %p107 = por %p105, %p106
      %p109 = scmp.ne.s32.totalorder %s92, %s108
      %p110 = scmp.eq.s32.totalorder %s20, 0
      %p111 = por %p109, %p110
      %s112 = ssub.s32 %s22, %s29
      %p113 = scmp.eq.s32.totalorder %s112, 0
      %s115 = sadd.s32 %s114, 1
      %s116 = scalar_select %p113, %s114, %s115
      %p119 = pneg %p113
      %p120 = scmp.eq.s32.totalorder %s14, 7
      %p121 = por %p119, %p120
      %p122 = scmp.ne.s32.totalorder %s114, %s117
      %p123 = scmp.eq.s32.totalorder %s14, 0
      %p124 = por %p122, %p123
      %p125 = scmp.ne.s32.totalorder %s114, %s117
      %p126 = scmp.eq.s32.totalorder %s19, 7
      %p127 = por %p125, %p126
      %p128 = scmp.ne.s32.totalorder %s117, %s118
      %p129 = scmp.eq.s32.totalorder %s19, 0
      %p130 = por %p128, %p129
      %p131 = scmp.ne.s32.totalorder %s117, %s118
      %p132 = scmp.eq.s32.totalorder %s20, 7
      %p133 = por %p131, %p132
      %p135 = scmp.ne.s32.totalorder %s118, %s134
      %p136 = scmp.eq.s32.totalorder %s20, 0
      %p137 = por %p135, %p136
      %s139 = sadd.s32 %s138, 1
      %p142 = scmp.eq.s32.totalorder %s14, 7
      %p143 = scmp.ne.s32.totalorder %s138, %s140
      %p144 = scmp.eq.s32.totalorder %s14, 0
      %p145 = por %p143, %p144
      %p146 = scmp.ne.s32.totalorder %s138, %s140
      %p147 = scmp.eq.s32.totalorder %s19, 7
      %p148 = por %p146, %p147
      %p149 = scmp.ne.s32.totalorder %s140, %s141
      %p150 = scmp.eq.s32.totalorder %s19, 0
      %p151 = por %p149, %p150
      %p152 = scmp.ne.s32.totalorder %s140, %s141
      %p153 = scmp.eq.s32.totalorder %s20, 7
      %p154 = por %p152, %p153
      %p156 = scmp.ne.s32.totalorder %s141, %s155
      %p157 = scmp.eq.s32.totalorder %s20, 0
      %p158 = por %p156, %p157
      %s159 = ssub.s32 %s21, %s33
      %p160 = scmp.eq.s32.totalorder %s159, 0
      %s162 = sadd.s32 %s161, 1
      %s163 = scalar_select %p160, %s161, %s162
      %p166 = pneg %p160
      %p167 = scmp.eq.s32.totalorder %s14, 7
      %p168 = por %p166, %p167
      %p169 = scmp.ne.s32.totalorder %s161, %s164
      %p170 = scmp.eq.s32.totalorder %s14, 0
      %p171 = por %p169, %p170
      %p172 = scmp.ne.s32.totalorder %s161, %s164
      %p173 = scmp.eq.s32.totalorder %s19, 7
      %p174 = por %p172, %p173
      %p175 = scmp.ne.s32.totalorder %s164, %s165
      %p176 = scmp.eq.s32.totalorder %s19, 0
      %p177 = por %p175, %p176
      %p178 = scmp.ne.s32.totalorder %s164, %s165
      %p179 = scmp.eq.s32.totalorder %s20, 7
      %p180 = por %p178, %p179
      %p182 = scmp.ne.s32.totalorder %s165, %s181
      %p183 = scmp.eq.s32.totalorder %s20, 0
      %p184 = por %p182, %p183
      %p185 = scmp.le.s32.totalorder 1, %s14
      %p186 = scmp.lt.s32.totalorder %s14, 9
      %p187 = pnand %p185, %p186
      %p188 = pneg %p187
      // Predicated region
      $region9: #{tpu_custom_call.1} parent=5 // pred_check
        _
      $region10: #{tpu_custom_call.1} parent=5 // pred_check_branch
        %190 = sbr.rel (%p187) target = $region12
      $region11: #{tpu_custom_call.1} parent=5 // pred_region
        %s191 = ssub.s32 %s14, 1
        // Predicated region
        $region13: #{tpu_custom_call.1} parent=11 // pred_check
          %p192 = pneg %p151
        $region14: #{tpu_custom_call.1} parent=11 // pred_check_branch
          %194 = sbr.rel (%p192) target = $region16
        $region15: #{tpu_custom_call.1} parent=11 // pred_region
          _
        $region16: #{tpu_custom_call.1} parent=11 // pred_fallthru
          _
      $region12: #{tpu_custom_call.1} parent=5 // pred_fallthru
        _
      %p195 = scmp.lt.s32.totalorder %s14, 8
      // Predicated region
      $region17: #{tpu_custom_call.1} parent=5 // pred_check
        %p196 = pneg %p195
      $region18: #{tpu_custom_call.1} parent=5 // pred_check_branch
        %198 = sbr.rel (%p196) target = $region20
      $region19: #{tpu_custom_call.1} parent=5 // pred_region
        // Predicated region
        $region21: #{tpu_custom_call.1} parent=19 // pred_check
          %p199 = pneg %p46
        $region22: #{tpu_custom_call.1} parent=19 // pred_check_branch
          %201 = sbr.rel (%p199) target = $region24
        $region23: #{tpu_custom_call.1} parent=19 // pred_region
          %p202 = scmp.lt.s32.totalorder %s21, 1
          %s203 = scalar_select %p202, %s21, 1
          %s204 = smul.addr %s203, 8
          %s205 = scalar_lea.vmem %s0, %s204
        $region24: #{tpu_custom_call.1} parent=19 // pred_fallthru
          _
        // Predicated region
        $region25: #{tpu_custom_call.1} parent=19 // pred_check
          %p206 = pneg %p72
        $region26: #{tpu_custom_call.1} parent=19 // pred_check_branch
          %208 = sbr.rel (%p206) target = $region28
        $region27: #{tpu_custom_call.1} parent=19 // pred_region
          %p209 = scmp.lt.s32.totalorder %s22, 3
          %s210 = scalar_select %p209, %s22, 3
          %s211 = smul.addr %s210, 4
          %s212 = smul.addr %s211, 4
          %s213 = scalar_lea.vmem %s1, %s212
        $region28: #{tpu_custom_call.1} parent=19 // pred_fallthru
          _
        // Predicated region
        $region29: #{tpu_custom_call.1} parent=19 // pred_check
          %p214 = pneg %p98
        $region30: #{tpu_custom_call.1} parent=19 // pred_check_branch
          %216 = sbr.rel (%p214) target = $region32
        $region31: #{tpu_custom_call.1} parent=19 // pred_region
          %p217 = scmp.lt.s32.totalorder %s22, 3
          %s218 = scalar_select %p217, %s22, 3
          %s219 = scalar_lea.vmem %s2, %s218
        $region32: #{tpu_custom_call.1} parent=19 // pred_fallthru
          _
        // Predicated region
        $region33: #{tpu_custom_call.1} parent=19 // pred_check
          %p220 = pneg %p124
        $region34: #{tpu_custom_call.1} parent=19 // pred_check_branch
          %222 = sbr.rel (%p220) target = $region36
        $region35: #{tpu_custom_call.1} parent=19 // pred_region
          %p223 = scmp.lt.s32.totalorder %s22, 3
          %s224 = scalar_select %p223, %s22, 3
          %s225 = smul.addr %s224, 4
          %s226 = scalar_lea.vmem %s3, %s225
        $region36: #{tpu_custom_call.1} parent=19 // pred_fallthru
          _
      $region20: #{tpu_custom_call.1} parent=5 // pred_fallthru
        _
      %p227 = scmp.le.s32.totalorder 1, %s14
      %p228 = scmp.lt.s32.totalorder %s14, 9
      %p229 = pnand %p227, %p228
      %p230 = pneg %p229
      // Predicated region
      $region37: #{tpu_custom_call.1} parent=5 // pred_check
        _
      $region38: #{tpu_custom_call.1} parent=5 // pred_check_branch
        %232 = sbr.rel (%p229) target = $region40
      $region39: #{tpu_custom_call.1} parent=5 // pred_region
        %s233 = ssub.s32 %s14, 1
        %p234 = scmp.lt.s32.totalorder %s23, 1
        %s235 = scalar_select %p234, %s23, 1
        %s236 = smul.addr %s235, 8
        %s237 = scalar_lea.vmem %s0, %s236
        %p238 = pneg %p52
        %p239 = pneg %p49
        %p240 = scmp.lt.s32.totalorder %s24, 3
        %s241 = scalar_select %p240, %s24, 3
        %s242 = smul.addr %s241, 4
        %s243 = smul.addr %s242, 4
        %s244 = scalar_lea.vmem %s1, %s243
        %p245 = pneg %p78
        %p246 = pneg %p75
        %p247 = scmp.lt.s32.totalorder %s24, 3
        %s248 = scalar_select %p247, %s24, 3
        %s249 = scalar_lea.vmem %s2, %s248
        %p250 = pneg %p104
        %p251 = pneg %p101
        %p252 = scmp.lt.s32.totalorder %s24, 3
        %s253 = scalar_select %p252, %s24, 3
        %s254 = smul.addr %s253, 4
        %s255 = scalar_lea.vmem %s3, %s254
        %p256 = pneg %p130
        %p257 = pneg %p127
        %p258 = pneg %p151
        %p259 = pneg %p148
        %p260 = pneg %p177
        %p261 = pneg %p174
        %s262 = sand.u32 %s164, 1
        %s263 = scalar_lea.sflag [#allocation6], %s262
        %s264 = sand.u32 %s164, 1
        %s265 = smul.addr %s264, 8
        %s266 = scalar_lea.vmem [#allocation5], %s265
        %p267 = scmp.lt.s32.totalorder %s23, 1
        %s268 = scalar_select %p267, %s23, 1
        %s269 = smul.addr %s268, 8
        %s270 = scalar_lea.vmem %s0, %s269
        %p271 = scmp.lt.s32.totalorder %s24, 3
        %s272 = scalar_select %p271, %s24, 3
        %s273 = smul.addr %s272, 4
        %s274 = smul.addr %s273, 4
        %s275 = scalar_lea.vmem %s1, %s274
        %p276 = scmp.lt.s32.totalorder %s24, 3
        %s277 = scalar_select %p276, %s24, 3
        %s278 = scalar_lea.vmem %s2, %s277
        %p279 = scmp.lt.s32.totalorder %s24, 3
        %s280 = scalar_select %p279, %s24, 3
        %s281 = smul.addr %s280, 4
        %s282 = scalar_lea.vmem %s3, %s281
        %v284 = vld [vmem:[%s270] sm:$0xff]
        %v285 = vpack.c.bf16 %v284, %v284
        %v286 = vld [vmem:[%s275] sm:$0xf]
        %v287 = vld [vmem:[%s275 + $0x4] sm:$0xf]
        %v288 = vld [vmem:[%s275 + $0x8] sm:$0xf]
        %v289 = vld [vmem:[%s275 + $0xc] sm:$0xf]
        %v290 = vld [vmem:[%s278] sm:$0x1]
        %v292 = vperm.slane %v290, 0
        %v298 = vunpack.c.l.b16 %v286
        %v299 = vunpack.c.l.b16 %v287
        %v300 = vunpack.c.l.b16 %v288
        %v301 = vunpack.c.l.b16 %v289
        %v302 = vpack.c.b16 %v299, %v298
        %v303 = vpack.c.b16 %v301, %v300
        %vm306 = vcmask 261120
        %v308 = vsel %vm306, %v285, 0
        %310 = vmatpush.bf16.msra.mxu0 0
        %311 = vmatpush.bf16.msra.mxu0 0
        %312 = vmatpush.bf16.msra.mxu0 0
        %313 = vmatpush.bf16.msra.mxu0 0
        %314 = vmatpush.bf16.msra.mxu0 0
        %315 = vmatpush.bf16.msra.mxu0 0
        %316 = vmatpush.bf16.msra.mxu0 %v303
        %317 = vmatpush.bf16.msra.mxu0 %v302
        %318 = vmatmul.bf16.gmra.mxu0 %v308
        %v319 = vpop.f32.mrf.mxu0
        %v320 = vadd.f32 %v292, %v319
        %v321 = vpop.f32.mrf.mxu0
        %322 = vdwg.mxu0
        %v323 = vmul.f32 %v320, 0.35355338
        %v324 = vpack.c.bf16 %v323, %v323
        %v325 = vpack.c.bf16 %v320, %v320
        %327 = vrot.lane.b32.xlu0 %v325, 120
        %v328 = vpop.permute.xlu0 %327
        %vm330 = vcmask 60416
        %331 = vst.msk [vmem:[#allocation3] sm:$0xf] %vm330, %v328
        %332 = vrot.lane.b32.xlu0 %v325, 112
        %v333 = vpop.permute.xlu0 %332
        %335 = vst.msk [vmem:[#allocation4] sm:$0xf] %vm330, %v333
        %v336 = vld [vmem:[#allocation3] sm:$0xf]
        %v337 = vld [vmem:[#allocation4] sm:$0xf]
        %vm338 = vcmask 64512
        %v340 = vsel %vm338, %v324, 0
        %v343 = vsel %vm338, %v336, 0
        %345 = vmatpush.bf16.xpose.msra.mxu0 0
        %346 = vmatpush.bf16.xpose.msra.mxu0 0
        %347 = vmatpush.bf16.xpose.msra.mxu0 0
        %348 = vmatpush.bf16.xpose.msra.mxu0 0
        %349 = vmatpush.bf16.xpose.msra.mxu0 0
        %350 = vmatpush.bf16.xpose.msra.mxu0 0
        %351 = vmatpush.bf16.xpose.msra.mxu0 0
        %352 = vmatpush.bf16.xpose.msra.mxu0 %v343
        %353 = vmatmul.bf16.gmra.mxu0 %v340
        %v354 = vpop.f32.mrf.mxu0
        %v355 = vadd.f32 0.0, %v354
        %v356 = vpop.f32.mrf.mxu0
        %357 = vdwg.mxu0
        %v358 = vsel %vm338, %v355, -inf
        %359 = vmax.xlane.f32.xlu0 %v358
        %v360 = vpop.xlane.xlu0 %359
        %v361 = vsub.f32 -inf, %v360
        %v362 = vmul.f32 %v361, 1.442695
        %v363 = vpow.pop %v362
        %v364 = vsub.f32 %v355, %v360
        %v365 = vmul.f32 %v364, 1.442695
        %v366 = vpow.pop %v365
        %v367 = vmul.f32 %v363, 0.0
        %v368 = vsel %vm338, %v366, 0.0
        %369 = vadd.xlane.f32.xlu0 %v368
        %v370 = vpop.xlane.xlu0 %369
        %v371 = vadd.f32 %v367, %v370
        %v372 = vpack.c.bf16 %v366, %v366
        %v374 = vsel %vm338, %v372, 0
        %vm376 = vcmask 1043456
        %v378 = vsel %vm376, %v337, 0
        %380 = vmatpush.bf16.msra.mxu0 0
        %381 = vmatpush.bf16.msra.mxu0 0
        %382 = vmatpush.bf16.msra.mxu0 0
        %383 = vmatpush.bf16.msra.mxu0 0
        %384 = vmatpush.bf16.msra.mxu0 0
        %385 = vmatpush.bf16.msra.mxu0 0
        %386 = vmatpush.bf16.msra.mxu0 0
        %387 = vmatpush.bf16.msra.mxu0 %v378
        %388 = vmatmul.bf16.gmra.mxu0 %v374
        %v389 = vpop.f32.mrf.mxu0
        %v390 = vadd.f32 0.0, %v389
        %v391 = vpop.f32.mrf.mxu0
        %392 = vdwg.mxu0
        %v393 = vadd.f32 %v367, %v390
        %v394 = vrcp.pop %v371
        %v395 = vmul.f32 %v393, %v394
        %p396 = scmp.eq.s32.totalorder %s24, 0
        // Predicated region
        $region41: #{tpu_custom_call.1} parent=39 // pred_check
          %p397 = pneg %p396
        $region42: #{tpu_custom_call.1} parent=39 // pred_check_branch
          %399 = sbr.rel (%p397) target = $region44
        $region43: #{tpu_custom_call.1} parent=39 // pred_region
          %400 = vst.msk [vmem:[#allocation2] sm:$0xff] %vm306, 0.0
        $region44: #{tpu_custom_call.1} parent=39 // pred_fallthru
          _
        %v401 = vld [vmem:[#allocation2] sm:$0xff]
        %v402 = vpack.c.bf16 %v395, %v395
        %v403 = vld [vmem:[%s282] sm:$0xf]
        %v405 = vsel %vm338, %v402, 0
        %v408 = vsel %vm376, %v403, 0
        %410 = vmatpush.bf16.msra.mxu0 0
        %411 = vmatpush.bf16.msra.mxu0 0
        %412 = vmatpush.bf16.msra.mxu0 0
        %413 = vmatpush.bf16.msra.mxu0 0
        %414 = vmatpush.bf16.msra.mxu0 0
        %415 = vmatpush.bf16.msra.mxu0 0
        %416 = vmatpush.bf16.msra.mxu0 0
        %417 = vmatpush.bf16.msra.mxu0 %v408
        %418 = vmatmul.bf16.gmra.mxu0 %v405
        %v419 = vpop.f32.mrf.mxu0
        %v420 = vadd.f32 0.0, %v419
        %v421 = vpop.f32.mrf.mxu0
        %422 = vdwg.mxu0
        %v423 = vadd.f32 %v401, %v420
        %424 = vst.msk [vmem:[#allocation2] sm:$0xff] %vm306, %v423
        %p425 = scmp.eq.s32.totalorder %s24, 3
        // Predicated region
        $region45: #{tpu_custom_call.1} parent=39 // pred_check
          %p426 = pneg %p425
        $region46: #{tpu_custom_call.1} parent=39 // pred_check_branch
          %428 = sbr.rel (%p426) target = $region48
        $region47: #{tpu_custom_call.1} parent=39 // pred_region
          %v429 = vld [vmem:[#allocation2] sm:$0xff]
          %v430 = vld [vmem:[%s4] sm:$0x1]
          %v432 = vperm.slane %v430, 0
          %v434 = vadd.f32 %v429, %v432
          %435 = vst.msk [vmem:[%s266] sm:$0xff] %vm306, %v434
        $region48: #{tpu_custom_call.1} parent=39 // pred_fallthru
          _
        %s436 = sand.u32 %s164, 1
        %s437 = scalar_lea.sflag [#allocation6], %s436
        %s438 = sand.u32 %s164, 1
        %s439 = smul.addr %s438, 8
        %s440 = scalar_lea.vmem [#allocation5], %s439
        // Predicated region
        $region49: #{tpu_custom_call.1} parent=39 // pred_check
          %p441 = pneg %p174
        $region50: #{tpu_custom_call.1} parent=39 // pred_check_branch
          %443 = sbr.rel (%p441) target = $region52
        $region51: #{tpu_custom_call.1} parent=39 // pred_region
          %445 = vsyncadd %s437, 0
          %s446 = smul.addr %s23, 8
          %s447 = scalar_lea.hbm %s5, %s446
          %s449 = sshll.u32 %s440, 4
          %s450 = int_to_ptr.vmem [resolvable:$true] %s449
          %s451 = sshll.u32 %s447, 4
          %s452 = int_to_ptr.hbm [resolvable:$true] %s451
          %454 = dma.vmem_to_hbm [thread:$0]  %s450, 128, %s452, %s437
        $region52: #{tpu_custom_call.1} parent=39 // pred_fallthru
          _
      $region40: #{tpu_custom_call.1} parent=5 // pred_fallthru
        _
      %p455 = scmp.le.s32.totalorder 2, %s14
      // Predicated region
      $region53: #{tpu_custom_call.1} parent=5 // pred_check
        %p456 = pneg %p455
      $region54: #{tpu_custom_call.1} parent=5 // pred_check_branch
        %458 = sbr.rel (%p456) target = $region56
      $region55: #{tpu_custom_call.1} parent=5 // pred_region
        %s459 = ssub.s32 %s14, 2
        // Predicated region
        $region57: #{tpu_custom_call.1} parent=55 // pred_check
          %p460 = pneg %p180
        $region58: #{tpu_custom_call.1} parent=55 // pred_check_branch
          %462 = sbr.rel (%p460) target = $region60
        $region59: #{tpu_custom_call.1} parent=55 // pred_region
          %s463 = sand.u32 %s165, 1
          %s464 = scalar_lea.sflag [#allocation6], %s463
          %s465 = sand.u32 %s165, 1
          %s466 = smul.addr %s465, 8
          %s467 = scalar_lea.vmem [#allocation5], %s466
          %469 = dma.done %s464, 128
        $region60: #{tpu_custom_call.1} parent=55 // pred_fallthru
          _
      $region56: #{tpu_custom_call.1} parent=5 // pred_fallthru
        _
    $region6: #{tpu_custom_call.1} parent=1 // loop_footer
      %s18 = sadd.s32 1, %s14
    $region7: #{tpu_custom_call.1} parent=1 // loop_footer_branch
      %13 = sbr.rel target = $region3
    $region8: #{tpu_custom_call.1} parent=1 // loop_exit
      _
    %470 = vsyncpa [#allocation6], 1
    %s471 = scalar_lea.sflag [#allocation6], 1
    %472 = vsyncpa %s471, 1

</llo_original>
